<compile_context>
chip_gen: v5e
topology: v5e:2x2
jax: 0.10.0
libtpu: 0.0.40
codegen_flags: <defaults>
</compile_context>

<pallas_src>
import functools
import math

import jax
import jax.numpy as jnp
from jax import lax
from jax.experimental import pallas as pl
from jax.experimental.pallas import tpu as pltpu


def _pick_tile(dim, target, multiple=8):
    """Largest tile t <= min(target, dim) with dim % t == 0 and t % multiple == 0.

    Falls back to the full extent (always a legal block shape) only if no such divisor exists.
    # TODO(synk): masked ragged-tail handling so a large prime-ish dim cannot force a
    # full-extent (VMEM-heavy) block.
    """
    t = min(target, dim)
    for cand in range(t, 0, -1):
        if dim % cand == 0 and cand % multiple == 0:
            return cand
    return dim


def _vmem_limit_bytes(frac=0.75, default=48 * 1024 * 1024):
    """3/4 of physical VMEM (v5e/v6e: ~96 MiB, v7x: ~48 MiB); conservative fallback."""
    try:
        return int(pltpu.get_tpu_info().vmem_capacity_bytes * frac)
    except Exception:
        return default


# ------------------------ fused QKV projection kernel ------------------------

def _make_proj_kernel(splits):
    offs = [0]
    for s in splits:
        offs.append(offs[-1] + s)

    def kernel(x_ref, w_ref, *refs):
        out_refs, acc_ref = refs[:-1], refs[-1]
        kk = pl.program_id(1)

        @pl.when(kk == 0)
        def _():
            acc_ref[...] = jnp.zeros_like(acc_ref)

        acc_ref[...] += jnp.dot(x_ref[...], w_ref[...],
                                preferred_element_type=jnp.float32)

        @pl.when(kk == pl.num_programs(1) - 1)
        def _():
            acc = acc_ref[...]
            for o_ref, lo, hi in zip(out_refs, offs[:-1], offs[1:]):
                o_ref[...] = acc[:, lo:hi].astype(o_ref.dtype)

    return kernel


def fused_projection(x2d, w_cat, splits, *, out_dtype, tm_target=512, tk_target=512):
    """x2d: (M, Cin) @ w_cat: (Cin, sum(splits)) -> tuple of (M, split_i) arrays in out_dtype.

    Activations are read from HBM once for all projections; f32 accumulator in VMEM;
    grid tiled over (M, K) with ("parallel", "arbitrary") semantics.
    """
    m, cin = x2d.shape
    n_total = w_cat.shape[1]
    assert n_total == sum(splits)
    tm = _pick_tile(m, tm_target, multiple=8)        # sublane dim of the x block
    tk = _pick_tile(cin, tk_target, multiple=128)    # lane dim of the x block

    out_shape = tuple(jax.ShapeDtypeStruct((m, s), out_dtype) for s in splits)
    out_specs = [pl.BlockSpec((tm, s), lambda i, kk: (i, 0)) for s in splits]

    return pl.pallas_call(
        _make_proj_kernel(splits),
        out_shape=out_shape,
        grid_spec=pltpu.PrefetchScalarGridSpec(
            num_scalar_prefetch=0,
            grid=(m // tm, cin // tk),
            in_specs=[
                pl.BlockSpec((tm, tk), lambda i, kk: (i, kk)),
                pl.BlockSpec((tk, n_total), lambda i, kk: (kk, 0)),
            ],
            out_specs=out_specs,
            scratch_shapes=[pltpu.VMEM((tm, n_total), jnp.float32)],
        ),
        compiler_params=pltpu.CompilerParams(
            dimension_semantics=("parallel", "arbitrary"),
            vmem_limit_bytes=_vmem_limit_bytes(),
        ),
    )(x2d, w_cat)


# ------------- flash attention + fused output projection kernel --------------

def _flash_attn_outproj_kernel(q_ref, k_ref, v_ref, wo_ref, bo_ref, o_ref,
                               m_ref, l_ref, acc_ref, *, heads, dim_head):
    ki = pl.program_id(2)

    @pl.when(ki == 0)
    def _():
        m_ref[...] = jnp.full_like(m_ref, -jnp.inf)
        l_ref[...] = jnp.zeros_like(l_ref)
        acc_ref[...] = jnp.zeros_like(acc_ref)

    q = q_ref[0]   # (tq, H*D); sm_scale already folded into Wq -> no per-step rescale
    k = k_ref[0]   # (tkv, H*D)
    v = v_ref[0]

    # Static head loop; heads selected via static column slices (no physical head transpose).
    # TODO(synk): for heads >= 8 with large tiles, bound the (tq, tkv) temporaries' live
    # ranges (fori_loop / head grid axis) instead of a static unroll.
    for h in range(heads):
        sl = slice(h * dim_head, (h + 1) * dim_head)
        qh, kh, vh = q[:, sl], k[:, sl], v[:, sl]
        # Contract last dims directly (NT form) -> no explicit K transpose emitted.
        s = lax.dot_general(qh, kh, (((1,), (1,)), ((), ())),
                            preferred_element_type=jnp.float32)       # (tq, tkv) f32
        m_prev = m_ref[h]                                             # (tq, 1)
        m_new = jnp.maximum(m_prev, jnp.max(s, axis=-1, keepdims=True))
        alpha = jnp.exp(m_prev - m_new)
        # Big exp in the compute dtype (bf16 EUP ~2x on v6e/v7x); m/l/acc stay f32.
        p = jnp.exp((s - m_new).astype(q_ref.dtype))                  # (tq, tkv)
        l_ref[h] = alpha * l_ref[h] + jnp.sum(p.astype(jnp.float32), axis=-1, keepdims=True)
        acc_ref[h] = alpha * acc_ref[h] + jnp.dot(p, vh, preferred_element_type=jnp.float32)
        m_ref[h] = m_new

    @pl.when(ki == pl.num_programs(2) - 1)
    def _():
        # Normalize each head, concat ONCE, then a single K = H*D matmul against Wo
        # (near-full MXU util instead of H small K=dim_head matmuls).
        heads_out = []
        for h in range(heads):
            inv = pl.reciprocal(l_ref[h], approx=True)
            heads_out.append((acc_ref[h] * inv).astype(wo_ref.dtype))
        o_cat = jnp.concatenate(heads_out, axis=-1)                   # (tq, H*D)
        out = jnp.dot(o_cat, wo_ref[...], preferred_element_type=jnp.float32)
        o_ref[0] = (out + bo_ref[...].astype(jnp.float32)).astype(o_ref.dtype)


def flash_attention_outproj(q, k, v, wo, bo, *, heads, dim_head, out_dtype,
                            tq_target=512, tkv_target=512):
    """q: (B, Nq, H*D), k/v: (B, Nk, H*D), wo: (H*D, Cq), bo: (Cq,) -> (B, Nq, Cq)."""
    b, nq, inner = q.shape
    nk = k.shape[1]
    cq = wo.shape[1]
    tq = _pick_tile(nq, tq_target, multiple=8)
    tkv = _pick_tile(nk, tkv_target, multiple=8)

    kernel = functools.partial(_flash_attn_outproj_kernel, heads=heads, dim_head=dim_head)

    # TODO(synk): pad Wo/bo out to a multiple of 128 lanes when Cq is lane-sparse (masked vst).
    return pl.pallas_call(
        kernel,
        out_shape=jax.ShapeDtypeStruct((b, nq, cq), out_dtype),
        grid_spec=pltpu.PrefetchScalarGridSpec(
            num_scalar_prefetch=0,
            grid=(b, nq // tq, nk // tkv),
            in_specs=[
                pl.BlockSpec((1, tq, inner), lambda bi, qi, ki: (bi, qi, 0)),
                pl.BlockSpec((1, tkv, inner), lambda bi, qi, ki: (bi, ki, 0)),
                pl.BlockSpec((1, tkv, inner), lambda bi, qi, ki: (bi, ki, 0)),
                pl.BlockSpec((inner, cq), lambda bi, qi, ki: (0, 0)),
                pl.BlockSpec((1, cq), lambda bi, qi, ki: (0, 0)),
            ],
            out_specs=pl.BlockSpec((1, tq, cq), lambda bi, qi, ki: (bi, qi, 0)),
            scratch_shapes=[
                pltpu.VMEM((heads, tq, 1), jnp.float32),          # running max  m
                pltpu.VMEM((heads, tq, 1), jnp.float32),          # running sum  l
                pltpu.VMEM((heads, tq, dim_head), jnp.float32),   # running acc  (per head)
            ],
        ),
        compiler_params=pltpu.CompilerParams(
            dimension_semantics=("parallel", "parallel", "arbitrary"),
            vmem_limit_bytes=_vmem_limit_bytes(),
        ),
    )(q, k, v, wo, bo.reshape(1, cq))


# ------------------------- module forward (wrapper) ---------------------------

def init_params(key, query_dim, context_dim, heads, dim_head, dtype=jnp.float32):
    inner_dim = heads * dim_head
    k1, k2, k3, k4, k5 = jax.random.split(key, 5)

    def uinit(k, fan_in, shape):
        bound = 1.0 / math.sqrt(fan_in)
        return jax.random.uniform(k, shape, dtype, minval=-bound, maxval=bound)

    return {
        "wq": uinit(k1, query_dim, (query_dim, inner_dim)),
        "wk": uinit(k2, context_dim, (context_dim, inner_dim)),
        "wv": uinit(k3, context_dim, (context_dim, inner_dim)),
        "wo": uinit(k4, inner_dim, (inner_dim, query_dim)),
        "bo": uinit(k5, inner_dim, (query_dim,)),
    }


def cross_attention_forward(x, context, params, heads, dim_head, scale=1.0,
                            qkv_dtype=jnp.bfloat16):
    """Equivalent of MemoryEfficientCrossAttention.forward with mask=None."""
    # TODO(synk): masked_forward (bicubic mask interpolation + fg/bg merge) not implemented.
    b, nq, cq_in = x.shape
    inner = heads * dim_head
    sm_scale = 1.0 / math.sqrt(dim_head)
    wq_scaled = params["wq"] * sm_scale          # fold softmax scale into Wq once (wrapper-side)

    if context is None:
        # Self-attention: single fused x @ [Wq*s | Wk | Wv] (x read from HBM once).
        w_cat = jnp.concatenate([wq_scaled, params["wk"], params["wv"]], axis=1)
        q2d, k2d, v2d = fused_projection(x.reshape(b * nq, cq_in), w_cat,
                                         (inner, inner, inner), out_dtype=qkv_dtype)
        nk = nq
    else:
        nk, ck = context.shape[1], context.shape[2]
        (q2d,) = fused_projection(x.reshape(b * nq, cq_in), wq_scaled, (inner,),
                                  out_dtype=qkv_dtype)
        w_kv = jnp.concatenate([params["wk"], params["wv"]], axis=1)
        k2d, v2d = fused_projection(context.reshape(b * nk, ck), w_kv, (inner, inner),
                                    out_dtype=qkv_dtype)

    q = q2d.reshape(b, nq, inner)
    k = k2d.reshape(b, nk, inner)
    v = v2d.reshape(b, nk, inner)

    # Fold the attention-output scale into Wo: (attn * scale) @ Wo == attn @ (Wo * scale).
    wo = (params["wo"] * scale).astype(qkv_dtype)
    return flash_attention_outproj(
        q, k, v, wo, params["bo"],
        heads=heads, dim_head=dim_head, out_dtype=x.dtype)


def reference_forward(x, context, params, heads, dim_head, scale=1.0):
    context = x if context is None else context
    q = x @ params["wq"]
    k = context @ params["wk"]
    v = context @ params["wv"]
    b, nq, _ = q.shape

    def split_heads(t):
        bb, s, _ = t.shape
        return t.reshape(bb, s, heads, dim_head).transpose(0, 2, 1, 3)

    qh, kh, vh = split_heads(q), split_heads(k), split_heads(v)
    s = jnp.einsum("bhqd,bhkd->bhqk", qh, kh) / math.sqrt(dim_head)
    p = jax.nn.softmax(s, axis=-1)
    oh = jnp.einsum("bhqk,bhkd->bhqd", p, vh) * scale
    out = oh.transpose(0, 2, 1, 3).reshape(b, nq, heads * dim_head)
    return out @ params["wo"] + params["bo"]


# ----------------------------------- main -------------------------------------

if __name__ == "__main__":
    query_dim = 32
    heads = 2
    dim_head = 16
    batch, seq, ctx_len = 2, 16, 24

    key = jax.random.PRNGKey(0)
    kx, kc, kp = jax.random.split(key, 3)
    x = jax.random.normal(kx, (batch, seq, query_dim), dtype=jnp.float32)
    params = init_params(kp, query_dim, query_dim, heads, dim_head)

    # 1) Self-attention path (context=None, module default), f32 compute -> tight check.
    out = cross_attention_forward(x, None, params, heads, dim_head, scale=1.0,
                                  qkv_dtype=jnp.float32)
    out = jax.block_until_ready(out)
    ref = reference_forward(x, None, params, heads, dim_head, scale=1.0)
    assert out.shape == (batch, seq, query_dim)
    assert jnp.allclose(out, ref, atol=5e-3, rtol=5e-3), "self-attn (f32) mismatch vs reference"

    # 2) Cross-attention path (different context length), default bf16 compute path.
    context = jax.random.normal(kc, (batch, ctx_len, query_dim), dtype=jnp.float32)
    out2 = cross_attention_forward(x, context, params, heads, dim_head, scale=0.5)
    out2 = jax.block_until_ready(out2)
    ref2 = reference_forward(x, context, params, heads, dim_head, scale=0.5)
    assert out2.shape == (batch, seq, query_dim)
    assert jnp.allclose(out2, ref2, atol=6e-2, rtol=6e-2), "cross-attn (bf16) mismatch vs reference"

    print("KERNEL_OK")
</pallas_src>

<mosaic_0001>
module attributes {stable_mosaic.version = 11 : i64} {
  func.func @kernel(%arg0: i32, %arg1: i32, %arg2: memref<32x32xf32, #tpu.memory_space<vmem>>, %arg3: memref<32x96xf32, #tpu.memory_space<vmem>>, %arg4: memref<32x32xf32, #tpu.memory_space<vmem>>, %arg5: memref<32x32xf32, #tpu.memory_space<vmem>>, %arg6: memref<32x32xf32, #tpu.memory_space<vmem>>, %arg7: memref<32x96xf32, #tpu.memory_space<vmem>>) attributes {dimension_semantics = [#tpu.dimension_semantics<parallel>, #tpu.dimension_semantics<arbitrary>], iteration_bounds = array<i64: 1, 1>, scalar_prefetch = 0 : i64, scratch_operands = 1 : i64, tpu.core_type = #tpu.core_type<tc>, window_params = [{transform_indices = @transform_0, window_bounds = array<i64: 32, 32>}, {transform_indices = @transform_1, window_bounds = array<i64: 32, 96>}, {transform_indices = @transform_2, window_bounds = array<i64: 32, 32>}, {transform_indices = @transform_3, window_bounds = array<i64: 32, 32>}, {transform_indices = @transform_4, window_bounds = array<i64: 32, 32>}]} {
    %c0_i32 = arith.constant 0 : i32
    %0 = arith.cmpi eq, %arg1, %c0_i32 : i32
    %1 = arith.extui %0 : i1 to i32
    %c0_i32_0 = arith.constant 0 : i32
    %2 = arith.cmpi ne, %1, %c0_i32_0 : i32
    scf.if %2 {
      %cst_10 = arith.constant 0.000000e+00 : f32
      %12 = vector.broadcast %cst_10 : f32 to vector<32x96xf32>
      %c0_11 = arith.constant 0 : index
      %c0_12 = arith.constant 0 : index
      %13 = vector.load %arg7[%c0_11, %c0_12] : memref<32x96xf32, #tpu.memory_space<vmem>>, vector<32x96xf32>
      tpu.vector_store %arg7[%c0_11, %c0_12], %12 {strides = array<i32>} : memref<32x96xf32, #tpu.memory_space<vmem>>, vector<32x96xf32>,
    } else {
    }
    %c0 = arith.constant 0 : index
    %c0_1 = arith.constant 0 : index
    %3 = vector.load %arg7[%c0, %c0_1] : memref<32x96xf32, #tpu.memory_space<vmem>>, vector<32x96xf32>
    %c0_2 = arith.constant 0 : index
    %c0_3 = arith.constant 0 : index
    %4 = vector.load %arg2[%c0_2, %c0_3] : memref<32x32xf32, #tpu.memory_space<vmem>>, vector<32x32xf32>
    %c0_4 = arith.constant 0 : index
    %c0_5 = arith.constant 0 : index
    %5 = vector.load %arg3[%c0_4, %c0_5] : memref<32x96xf32, #tpu.memory_space<vmem>>, vector<32x96xf32>
    %cst = arith.constant dense<0.000000e+00> : vector<32x96xf32>
    %6 = tpu.matmul %4, %5, %cst {dimension_numbers = #tpu.dot_dimension_numbers<[1], [0], [0], [1], [0, 0, 1, 1], [], []>} : vector<32x32xf32>, vector<32x96xf32>, vector<32x96xf32> -> vector<32x96xf32>
    %7 = arith.addf %3, %6 : vector<32x96xf32>
    %c0_6 = arith.constant 0 : index
    %c0_7 = arith.constant 0 : index
    %8 = vector.load %arg7[%c0_6, %c0_7] : memref<32x96xf32, #tpu.memory_space<vmem>>, vector<32x96xf32>
    tpu.vector_store %arg7[%c0_6, %c0_7], %7 {strides = array<i32>} : memref<32x96xf32, #tpu.memory_space<vmem>>, vector<32x96xf32>,
    %c0_i32_8 = arith.constant 0 : i32
    %9 = arith.cmpi eq, %arg1, %c0_i32_8 : i32
    %10 = arith.extui %9 : i1 to i32
    %c0_i32_9 = arith.constant 0 : i32
    %11 = arith.cmpi ne, %10, %c0_i32_9 : i32
    scf.if %11 {
      %c0_10 = arith.constant 0 : index
      %c0_11 = arith.constant 0 : index
      %12 = vector.load %arg7[%c0_10, %c0_11] : memref<32x96xf32, #tpu.memory_space<vmem>>, vector<32x96xf32>
      %13 = vector.extract_strided_slice %12 {offsets = [0, 0], sizes = [32, 32], strides = [1, 1]} : vector<32x96xf32> to vector<32x32xf32>
      %c0_12 = arith.constant 0 : index
      %c0_13 = arith.constant 0 : index
      %14 = vector.load %arg4[%c0_12, %c0_13] : memref<32x32xf32, #tpu.memory_space<vmem>>, vector<32x32xf32>
      tpu.vector_store %arg4[%c0_12, %c0_13], %13 {strides = array<i32>} : memref<32x32xf32, #tpu.memory_space<vmem>>, vector<32x32xf32>,
      %15 = vector.extract_strided_slice %12 {offsets = [0, 32], sizes = [32, 32], strides = [1, 1]} : vector<32x96xf32> to vector<32x32xf32>
      %c0_14 = arith.constant 0 : index
      %c0_15 = arith.constant 0 : index
      %16 = vector.load %arg5[%c0_14, %c0_15] : memref<32x32xf32, #tpu.memory_space<vmem>>, vector<32x32xf32>
      tpu.vector_store %arg5[%c0_14, %c0_15], %15 {strides = array<i32>} : memref<32x32xf32, #tpu.memory_space<vmem>>, vector<32x32xf32>,
      %17 = vector.extract_strided_slice %12 {offsets = [0, 64], sizes = [32, 32], strides = [1, 1]} : vector<32x96xf32> to vector<32x32xf32>
      %c0_16 = arith.constant 0 : index
      %c0_17 = arith.constant 0 : index
      %18 = vector.load %arg6[%c0_16, %c0_17] : memref<32x32xf32, #tpu.memory_space<vmem>>, vector<32x32xf32>
      tpu.vector_store %arg6[%c0_16, %c0_17], %17 {strides = array<i32>} : memref<32x32xf32, #tpu.memory_space<vmem>>, vector<32x32xf32>,
    } else {
    }
    return
  }
  func.func @transform_0(%arg0: i32, %arg1: i32) -> (i32, i32) {
    %c0_i32 = arith.constant 0 : i32
    return %arg0, %arg1 : i32, i32
  }
  func.func @transform_1(%arg0: i32, %arg1: i32) -> (i32, i32) {
    %c0_i32 = arith.constant 0 : i32
    %c0_i32_0 = arith.constant 0 : i32
    return %arg1, %c0_i32 : i32, i32
  }
  func.func @transform_2(%arg0: i32, %arg1: i32) -> (i32, i32) {
    %c0_i32 = arith.constant 0 : i32
    %c0_i32_0 = arith.constant 0 : i32
    return %arg0, %c0_i32 : i32, i32
  }
  func.func @transform_3(%arg0: i32, %arg1: i32) -> (i32, i32) {
    %c0_i32 = arith.constant 0 : i32
    %c0_i32_0 = arith.constant 0 : i32
    return %arg0, %c0_i32 : i32, i32
  }
  func.func @transform_4(%arg0: i32, %arg1: i32) -> (i32, i32) {
    %c0_i32 = arith.constant 0 : i32
    %c0_i32_0 = arith.constant 0 : i32
    return %arg0, %c0_i32 : i32, i32
  }
}

</mosaic_0001>

<llo_original>
// kernel: tpu_custom_call.1
$region0: #{tpu_custom_call.1}
  #allocation0 [shape = 'u32[]', space=smem, size = 0x4, offset = 0x4, fixed_abs, tag = 'smem constant byte address 0x4 - core index']
  #allocation1 [shape = 'u32[72,128]{1,0:T(1,128)}', space=vmem, size = 0x9000, scoped, tag = 'internal scratch']
  #allocation2 [shape = 'f32[32,96]{1,0:T(8,128)}', space=vmem, size = 0x4000, scoped, tag = 'scratch operand']
  %s0 = inlined_call_operand.hbm [shape: f32[32,32], index: 0, kind: input, shape index: {}]
  %s1 = inlined_call_operand.hbm [shape: f32[32,96], index: 1, kind: input, shape index: {}]
  %s2 = inlined_call_operand.hbm [shape: f32[32,32], index: 2, kind: output, shape index: {0}]
  %s3 = inlined_call_operand.hbm [shape: f32[32,32], index: 3, kind: output, shape index: {1}]
  %s4 = inlined_call_operand.hbm [shape: f32[32,32], index: 4, kind: output, shape index: {2}]
  %5 = xla_tuple %s2, %s3, %s4
  %s6 = sld [smem:[#allocation0]]
  $region50: #{tpu_custom_call.1} parent=0
    _
  %s8 = ssub.s32 1, %s6
  %s9 = scalar_select 0, %s8, %s6
  $region1: #{tpu_custom_call.1} parent=0
    #allocation3 [shape = 'u8[16384]{0}', space=vmem, size = 0x4000, scoped, tag = 'input window, operand 0, single buffered']
    #allocation4 [shape = 's32[1]{0}', space=sflag, size = 0x4, scoped, tag = 'scoped memory for tpu_custom_call.1']
    #allocation5 [shape = 's32[1]{0}', space=sflag, size = 0x4, scoped, tag = 'scoped memory for tpu_custom_call.1']
    #allocation6 [shape = 'u8[16384]{0}', space=vmem, size = 0x4000, scoped, tag = 'input window, operand 1, single buffered']
    #allocation7 [shape = 's32[1]{0}', space=sflag, size = 0x4, scoped, tag = 'scoped memory for tpu_custom_call.1']
    #allocation8 [shape = 'u8[16384]{0}', space=vmem, size = 0x4000, scoped, tag = 'output window, operand 0, single buffered']
    #allocation9 [shape = 'u8[16384]{0}', space=vmem, size = 0x4000, scoped, tag = 'output window, operand 1, single buffered']
    #allocation10 [shape = 's32[1]{0}', space=sflag, size = 0x4, scoped, tag = 'scoped memory for tpu_custom_call.1']
    #allocation11 [shape = 'u8[16384]{0}', space=vmem, size = 0x4000, scoped, tag = 'output window, operand 2, single buffered']
    %10 = vsyncpa [#allocation4], 0
    %11 = vsyncpa [#allocation7], 0
    %12 = vsyncpa [#allocation5], 0
    %13 = vsyncpa [#allocation10], 0
    // Predicated region
    $region2: #{tpu_custom_call.1} parent=1 // pred_check
      _
    $region3: #{tpu_custom_call.1} parent=1 // pred_check_branch
      %15 = sbr.rel (0) target = $region5
    $region4: #{tpu_custom_call.1} parent=1 // pred_region
      %17 = vsyncadd [#allocation4], 0
      %s18 = sshll.u32 %s0, 4
      %s19 = int_to_ptr.hbm [resolvable:$true] %s18
      %s20 = sshll.u32 [#allocation3], 4
      %s21 = int_to_ptr.vmem [resolvable:$true] %s20
      %26 = dma.hbm_to_vmem [thread:$0]  %s19, 512, %s21, [#allocation4], 128, 128, 8
    $region5: #{tpu_custom_call.1} parent=1 // pred_fallthru
      _
    // Predicated region
    $region6: #{tpu_custom_call.1} parent=1 // pred_check
      _
    $region7: #{tpu_custom_call.1} parent=1 // pred_check_branch
      %28 = sbr.rel (0) target = $region9
    $region8: #{tpu_custom_call.1} parent=1 // pred_region
      %30 = vsyncadd [#allocation7], 0
      %s31 = sshll.u32 %s1, 4
      %s32 = int_to_ptr.hbm [resolvable:$true] %s31
      %s33 = sshll.u32 [#allocation6], 4
      %s34 = int_to_ptr.vmem [resolvable:$true] %s33
      %39 = dma.hbm_to_vmem [thread:$0]  %s32, 512, %s34, [#allocation7], 128, 128, 8
    $region9: #{tpu_custom_call.1} parent=1 // pred_fallthru
      _
    // Predicated region
    $region10: #{tpu_custom_call.1} parent=1 // pred_check
      _
    $region11: #{tpu_custom_call.1} parent=1 // pred_check_branch
      %41 = sbr.rel (0) target = $region13
    $region12: #{tpu_custom_call.1} parent=1 // pred_region
      %43 = dma.done [#allocation4], 512
    $region13: #{tpu_custom_call.1} parent=1 // pred_fallthru
      _
    // Predicated region
    $region14: #{tpu_custom_call.1} parent=1 // pred_check
      _
    $region15: #{tpu_custom_call.1} parent=1 // pred_check_branch
      %45 = sbr.rel (0) target = $region17
    $region16: #{tpu_custom_call.1} parent=1 // pred_region
      %47 = dma.done [#allocation7], 512
    $region17: #{tpu_custom_call.1} parent=1 // pred_fallthru
      _
    %p48 = scmp.eq.s32.totalorder 0, 0
    // Predicated region
    $region18: #{tpu_custom_call.1} parent=1 // pred_check
      %p49 = pneg %p48
    $region19: #{tpu_custom_call.1} parent=1 // pred_check_branch
      %51 = sbr.rel (%p49) target = $region21
    $region20: #{tpu_custom_call.1} parent=1 // pred_region
      %vm52 = vcmask 785408
      %53 = vst.msk [vmem:[#allocation2] sm:$0xff] %vm52, 0.0
      %54 = vst.msk [vmem:[#allocation2 + $0x8] sm:$0xff] %vm52, 0.0
      %55 = vst.msk [vmem:[#allocation2 + $0x10] sm:$0xff] %vm52, 0.0
      %56 = vst.msk [vmem:[#allocation2 + $0x18] sm:$0xff] %vm52, 0.0
    $region21: #{tpu_custom_call.1} parent=1 // pred_fallthru
      _
    %v57 = vld [vmem:[#allocation2] sm:$0xff]
    %v58 = vld [vmem:[#allocation2 + $0x8] sm:$0xff]
    %v59 = vld [vmem:[#allocation2 + $0x10] sm:$0xff]
    %v60 = vld [vmem:[#allocation2 + $0x18] sm:$0xff]
    %v61 = vld [vmem:[#allocation3] sm:$0xff]
    %v62 = vld [vmem:[#allocation3 + $0x8] sm:$0xff]
    %v63 = vld [vmem:[#allocation3 + $0x10] sm:$0xff]
    %v64 = vld [vmem:[#allocation3 + $0x18] sm:$0xff]
    %v65 = vld [vmem:[#allocation6] sm:$0xff]
    %v66 = vld [vmem:[#allocation6 + $0x8] sm:$0xff]
    %v67 = vld [vmem:[#allocation6 + $0x10] sm:$0xff]
    %v68 = vld [vmem:[#allocation6 + $0x18] sm:$0xff]
    %vm69 = vcmask 261120
    %v71 = vsel %vm69, %v61, 0
    %v74 = vsel %vm69, %v62, 0
    %v77 = vsel %vm69, %v63, 0
    %v80 = vsel %vm69, %v64, 0
    %82 = vmatpush.msra.mxu0 0.0
    %83 = vmatpush.msra.mxu0 0.0
    %84 = vmatpush.msra.mxu0 0.0
    %85 = vmatpush.msra.mxu0 0.0
    %86 = vmatpush.msra.mxu0 0.0
    %87 = vmatpush.msra.mxu0 0.0
    %88 = vmatpush.msra.mxu0 0.0
    %89 = vmatpush.msra.mxu0 0.0
    %90 = vmatpush.msra.mxu0 0.0
    %91 = vmatpush.msra.mxu0 0.0
    %92 = vmatpush.msra.mxu0 0.0
    %93 = vmatpush.msra.mxu0 0.0
    %94 = vmatpush.msra.mxu0 %v68
    %95 = vmatpush.msra.mxu0 %v67
    %96 = vmatpush.msra.mxu0 %v66
    %97 = vmatpush.msra.mxu0 %v65
    %98 = vmatmul.f32.gmra.mxu0 %v71
    %v99 = vpop.f32.mrf.mxu0
    %v100 = vadd.f32 0.0, %v99
    %101 = vmatmul.f32.gmra.mxu0 %v74
    %v102 = vpop.f32.mrf.mxu0
    %v103 = vadd.f32 0.0, %v102
    %104 = vmatmul.f32.gmra.mxu0 %v77
    %v105 = vpop.f32.mrf.mxu0
    %v106 = vadd.f32 0.0, %v105
    %107 = vmatmul.f32.gmra.mxu0 %v80
    %v108 = vpop.f32.mrf.mxu0
    %v109 = vadd.f32 0.0, %v108
    %110 = vdwg.mxu0
    %v111 = vadd.f32 %v57, %v100
    %v112 = vadd.f32 %v58, %v103
    %v113 = vadd.f32 %v59, %v106
    %v114 = vadd.f32 %v60, %v109
    %vm115 = vcmask 785408
    %116 = vst.msk [vmem:[#allocation2] sm:$0xff] %vm115, %v111
    %117 = vst.msk [vmem:[#allocation2 + $0x8] sm:$0xff] %vm115, %v112
    %118 = vst.msk [vmem:[#allocation2 + $0x10] sm:$0xff] %vm115, %v113
    %119 = vst.msk [vmem:[#allocation2 + $0x18] sm:$0xff] %vm115, %v114
    // Predicated region
    $region22: #{tpu_custom_call.1} parent=1 // pred_check
      %p120 = pneg %p48
    $region23: #{tpu_custom_call.1} parent=1 // pred_check_branch
      %122 = sbr.rel (%p120) target = $region25
    $region24: #{tpu_custom_call.1} parent=1 // pred_region
      %v123 = vld [vmem:[#allocation2] sm:$0xff]
      %v124 = vld [vmem:[#allocation2 + $0x8] sm:$0xff]
      %v125 = vld [vmem:[#allocation2 + $0x10] sm:$0xff]
      %v126 = vld [vmem:[#allocation2 + $0x18] sm:$0xff]
      %127 = vst.msk [vmem:[#allocation8] sm:$0xff] %vm69, %v123
      %128 = vst.msk [vmem:[#allocation8 + $0x8] sm:$0xff] %vm69, %v124
      %129 = vst.msk [vmem:[#allocation8 + $0x10] sm:$0xff] %vm69, %v125
      %130 = vst.msk [vmem:[#allocation8 + $0x18] sm:$0xff] %vm69, %v126
      %135 = vrot.lane.b32.xlu0 %v123, 96
      %v136 = vpop.permute.xlu0 %135
      %137 = vrot.lane.b32.xlu0 %v124, 96
      %v138 = vpop.permute.xlu0 %137
      %139 = vrot.lane.b32.xlu0 %v125, 96
      %v140 = vpop.permute.xlu0 %139
      %141 = vrot.lane.b32.xlu0 %v126, 96
      %v142 = vpop.permute.xlu0 %141
      %147 = vst.msk [vmem:[#allocation9] sm:$0xff] %vm69, %v136
      %148 = vst.msk [vmem:[#allocation9 + $0x8] sm:$0xff] %vm69, %v138
      %149 = vst.msk [vmem:[#allocation9 + $0x10] sm:$0xff] %vm69, %v140
      %150 = vst.msk [vmem:[#allocation9 + $0x18] sm:$0xff] %vm69, %v142
      %151 = vrot.lane.b32.xlu0 %v123, 64
      %v152 = vpop.permute.xlu0 %151
      %153 = vrot.lane.b32.xlu0 %v124, 64
      %v154 = vpop.permute.xlu0 %153
      %155 = vrot.lane.b32.xlu0 %v125, 64
      %v156 = vpop.permute.xlu0 %155
      %157 = vrot.lane.b32.xlu0 %v126, 64
      %v158 = vpop.permute.xlu0 %157
      %163 = vst.msk [vmem:[#allocation11] sm:$0xff] %vm69, %v152
      %164 = vst.msk [vmem:[#allocation11 + $0x8] sm:$0xff] %vm69, %v154
      %165 = vst.msk [vmem:[#allocation11 + $0x10] sm:$0xff] %vm69, %v156
      %166 = vst.msk [vmem:[#allocation11 + $0x18] sm:$0xff] %vm69, %v158
    $region25: #{tpu_custom_call.1} parent=1 // pred_fallthru
      _
    // Predicated region
    $region26: #{tpu_custom_call.1} parent=1 // pred_check
      _
    $region27: #{tpu_custom_call.1} parent=1 // pred_check_branch
      %168 = sbr.rel (0) target = $region29
    $region28: #{tpu_custom_call.1} parent=1 // pred_region
      %170 = vsyncadd [#allocation5], 0
      %s171 = sshll.u32 [#allocation8], 4
      %s172 = int_to_ptr.vmem [resolvable:$true] %s171
      %s173 = sshll.u32 %s2, 4
      %s174 = int_to_ptr.hbm [resolvable:$true] %s173
      %179 = dma.vmem_to_hbm [thread:$0]  %s172, 512, %s174, [#allocation5], 128, 128, 8
    $region29: #{tpu_custom_call.1} parent=1 // pred_fallthru
      _
    // Predicated region
    $region30: #{tpu_custom_call.1} parent=1 // pred_check
      _
    $region31: #{tpu_custom_call.1} parent=1 // pred_check_branch
      %181 = sbr.rel (0) target = $region33
    $region32: #{tpu_custom_call.1} parent=1 // pred_region
      %183 = vsyncadd [#allocation10], 0
      %s184 = sshll.u32 [#allocation9], 4
      %s185 = int_to_ptr.vmem [resolvable:$true] %s184
      %s186 = sshll.u32 %s3, 4
      %s187 = int_to_ptr.hbm [resolvable:$true] %s186
      %192 = dma.vmem_to_hbm [thread:$0]  %s185, 512, %s187, [#allocation10], 128, 128, 8
    $region33: #{tpu_custom_call.1} parent=1 // pred_fallthru
      _
    // Predicated region
    $region34: #{tpu_custom_call.1} parent=1 // pred_check
      _
    $region35: #{tpu_custom_call.1} parent=1 // pred_check_branch
      %194 = sbr.rel (0) target = $region37
    $region36: #{tpu_custom_call.1} parent=1 // pred_region
      %196 = vsyncadd [#allocation10], 0
      %s197 = sshll.u32 [#allocation11], 4
      %s198 = int_to_ptr.vmem [resolvable:$true] %s197
      %s199 = sshll.u32 %s4, 4
      %s200 = int_to_ptr.hbm [resolvable:$true] %s199
      %205 = dma.vmem_to_hbm [thread:$0]  %s198, 512, %s200, [#allocation10], 128, 128, 8
    $region37: #{tpu_custom_call.1} parent=1 // pred_fallthru
      _
    // Predicated region
    $region38: #{tpu_custom_call.1} parent=1 // pred_check
      _
    $region39: #{tpu_custom_call.1} parent=1 // pred_check_branch
      %207 = sbr.rel (0) target = $region41
    $region40: #{tpu_custom_call.1} parent=1 // pred_region
      %209 = dma.done [#allocation5], 512
    $region41: #{tpu_custom_call.1} parent=1 // pred_fallthru
      _
    // Predicated region
    $region42: #{tpu_custom_call.1} parent=1 // pred_check
      _
    $region43: #{tpu_custom_call.1} parent=1 // pred_check_branch
      %211 = sbr.rel (0) target = $region45
    $region44: #{tpu_custom_call.1} parent=1 // pred_region
      %213 = dma.done [#allocation10], 512
    $region45: #{tpu_custom_call.1} parent=1 // pred_fallthru
      _
    // Predicated region
    $region46: #{tpu_custom_call.1} parent=1 // pred_check
      _
    $region47: #{tpu_custom_call.1} parent=1 // pred_check_branch
      %215 = sbr.rel (0) target = $region49
    $region48: #{tpu_custom_call.1} parent=1 // pred_region
      %217 = dma.done [#allocation10], 512
    $region49: #{tpu_custom_call.1} parent=1 // pred_fallthru
      _
    %218 = vsyncpa [#allocation4], 1
    %219 = vsyncpa [#allocation7], 1
    %220 = vsyncpa [#allocation5], 1
    %221 = vsyncpa [#allocation10], 1

</llo_original>
